<compile_context>
chip_gen: v7x
topology: tpu7x:2x2x1
jax: 0.10.0
libtpu: 0.0.40
codegen_flags: <defaults>
</compile_context>

<pallas_src>
import functools

import jax
import jax.numpy as jnp
from jax.experimental import pallas as pl
from jax.experimental.pallas import tpu as pltpu

# (fan_in, fan_out) of the four nn.Linear layers in AnnWine.
_DIMS = [(11, 16), (16, 32), (32, 32), (32, 1)]
_FLOPS_PER_ROW = 2 * sum(fi * fo for fi, fo in _DIMS)   # MAC -> 2 flops


def _mlp_kernel(xt_ref, w0_ref, b0_ref, w1_ref, b1_ref, w2_ref, b2_ref,
                w3_ref, b3_ref, o_ref):
    """Fused 4-layer MLP; batch on lanes; f32 MXU accumulation throughout."""
    xt = xt_ref[...]                                                  # (11, Bb)
    h = jnp.dot(w0_ref[...], xt, preferred_element_type=jnp.float32)  # (16, Bb)
    h = jnp.maximum(h + b0_ref[...], 0.0)
    h = jnp.dot(w1_ref[...], h, preferred_element_type=jnp.float32)   # (32, Bb)
    h = jnp.maximum(h + b1_ref[...], 0.0)
    h = jnp.dot(w2_ref[...], h, preferred_element_type=jnp.float32)   # (32, Bb)
    h = jnp.maximum(h + b2_ref[...], 0.0)
    out = jnp.dot(w3_ref[...], h, preferred_element_type=jnp.float32)  # (1, Bb)
    out = out + b3_ref[0, 0]                       # scalar output bias from SMEM
    o_ref[...] = out.astype(o_ref.dtype)           # (1, Bb) lane-dense store


def _choose_block_b(batch):
    """Lane-aligned batch tile.

    Big enough to amortize the ~0.35us/step grid overhead, small enough that
    batches >= 256 rows always get >= 2 grid steps (so the "parallel" grid axis
    can be split across both TensorCores on v7x).
    """
    b_aligned = -(-max(batch, 1) // 128) * 128        # round up to 128 lanes
    block_b = min(4096, b_aligned)
    if b_aligned >= 256:                              # guarantee >= 2 grid steps
        half = -(-(b_aligned // 2) // 128) * 128
        block_b = min(block_b, half)
    return block_b


@functools.partial(jax.jit, static_argnames=("block_b",))
def ann_wine_forward(x, params, *, block_b=None):
    """Pallas forward pass of AnnWine.  x: (B, 11) float32 -> (B, 1) float32."""
    (w0, b0), (w1, b1), (w2, b2), (w3, b3) = params
    B, F = x.shape
    assert F == 11, f"expected 11 input features, got {F}"

    if block_b is None:
        block_b = _choose_block_b(B)

    pad = (-B) % block_b
    Bp = B + pad
    # Layout plumbing: zero-pad the batch, put batch on the lane axis.
    xt = jnp.pad(x.astype(jnp.float32), ((0, pad), (0, 0))).T         # (11, Bp)

    grid = (Bp // block_b,)

    def full_spec(arr):
        # Tiny weights/biases: full-array VMEM blocks with constant index_map
        # (DMA'd once, resident across the whole grid).
        return pl.BlockSpec(arr.shape, lambda i: (0,) * arr.ndim)

    weight_bytes = 4 * sum(fi * fo + fo for fi, fo in _DIMS)
    cost = pl.CostEstimate(
        flops=_FLOPS_PER_ROW * Bp,
        transcendentals=0,
        bytes_accessed=4 * (Bp * 11 + Bp * 1) + weight_bytes,
    )

    out = pl.pallas_call(
        _mlp_kernel,
        out_shape=jax.ShapeDtypeStruct((1, Bp), jnp.float32),
        grid=grid,
        in_specs=[
            pl.BlockSpec((11, block_b), lambda i: (0, i)),            # x^T tile
            full_spec(w0), full_spec(b0),
            full_spec(w1), full_spec(b1),
            full_spec(w2), full_spec(b2),
            full_spec(w3),
            pl.BlockSpec(memory_space=pltpu.MemorySpace.SMEM),        # b3: (1,1)
        ],
        out_specs=pl.BlockSpec((1, block_b), lambda i: (0, i)),
        compiler_params=pltpu.CompilerParams(
            dimension_semantics=("parallel",)),
        cost_estimate=cost,
    )(xt, w0, b0, w1, b1, w2, b2, w3, b3)

    # (1, Bp) row-major == batch order; drop padded columns, restore (B, 1).
    return out.reshape(Bp, 1)[:B]


def init_params(key):
    """Deterministic init mirroring nn.Linear's uniform(-1/sqrt(fan_in), ...).
    Weights stored (out, in) like PyTorch; biases stored as (out, 1) columns."""
    params = []
    for fan_in, fan_out in _DIMS:
        key, kw, kb = jax.random.split(key, 3)
        bound = 1.0 / jnp.sqrt(fan_in)
        w = jax.random.uniform(kw, (fan_out, fan_in), jnp.float32, -bound, bound)
        b = jax.random.uniform(kb, (fan_out, 1), jnp.float32, -bound, bound)
        params.append((w, b))
    return params


def reference_forward(x, params):
    """Pure-JAX reference matching the PyTorch module."""
    h = x
    for i, (w, b) in enumerate(params):
        h = h @ w.T + b.reshape(1, -1)
        if i < len(params) - 1:
            h = jnp.maximum(h, 0.0)
    return h


if __name__ == "__main__":
    key = jax.random.PRNGKey(0)
    key, kx = jax.random.split(key)
    B = 16
    x = jax.random.normal(kx, (B, 11), jnp.float32)

    params = init_params(key)

    out = ann_wine_forward(x, params)
    out = jax.block_until_ready(out)

    ref = reference_forward(x, params)
    assert out.shape == (B, 1), f"bad output shape {out.shape}"
    assert jnp.allclose(out, ref, atol=1e-5, rtol=1e-5), "mismatch vs reference"
    print("KERNEL_OK")
</pallas_src>

<mosaic_0001>
module attributes {stable_mosaic.version = 11 : i64} {
  func.func @_mlp_kernel(%arg0: i32, %arg1: memref<11x128xf32, #tpu.memory_space<vmem>>, %arg2: memref<16x11xf32, #tpu.memory_space<vmem>>, %arg3: memref<16x1xf32, #tpu.memory_space<vmem>>, %arg4: memref<32x16xf32, #tpu.memory_space<vmem>>, %arg5: memref<32x1xf32, #tpu.memory_space<vmem>>, %arg6: memref<32x32xf32, #tpu.memory_space<vmem>>, %arg7: memref<32x1xf32, #tpu.memory_space<vmem>>, %arg8: memref<1x32xf32, #tpu.memory_space<vmem>>, %arg9: memref<1x1xf32, #tpu.memory_space<smem>>, %arg10: memref<1x128xf32, #tpu.memory_space<vmem>>) attributes {dimension_semantics = [#tpu.dimension_semantics<parallel>], iteration_bounds = array<i64: 1>, scalar_prefetch = 0 : i64, scratch_operands = 0 : i64, tpu.core_type = #tpu.core_type<tc>, window_params = [{transform_indices = @transform_0, window_bounds = array<i64: 11, 128>}, {pipeline_mode = #tpu.pipeline_mode<synchronous>, transform_indices = @transform_1, window_bounds = array<i64: 16, 11>}, {pipeline_mode = #tpu.pipeline_mode<synchronous>, transform_indices = @transform_2, window_bounds = array<i64: 16, 1>}, {pipeline_mode = #tpu.pipeline_mode<synchronous>, transform_indices = @transform_3, window_bounds = array<i64: 32, 16>}, {pipeline_mode = #tpu.pipeline_mode<synchronous>, transform_indices = @transform_4, window_bounds = array<i64: 32, 1>}, {pipeline_mode = #tpu.pipeline_mode<synchronous>, transform_indices = @transform_5, window_bounds = array<i64: 32, 32>}, {pipeline_mode = #tpu.pipeline_mode<synchronous>, transform_indices = @transform_6, window_bounds = array<i64: 32, 1>}, {pipeline_mode = #tpu.pipeline_mode<synchronous>, transform_indices = @transform_7, window_bounds = array<i64: 1, 32>}, {transform_indices = @transform_8, window_bounds = array<i64: 1, 1>}, {transform_indices = @transform_9, window_bounds = array<i64: 1, 128>}]} {
    %c0 = arith.constant 0 : index
    %c0_0 = arith.constant 0 : index
    %0 = vector.load %arg1[%c0, %c0_0] : memref<11x128xf32, #tpu.memory_space<vmem>>, vector<11x128xf32>
    %c0_1 = arith.constant 0 : index
    %c0_2 = arith.constant 0 : index
    %1 = vector.load %arg2[%c0_1, %c0_2] : memref<16x11xf32, #tpu.memory_space<vmem>>, vector<16x11xf32>
    %cst = arith.constant dense<0.000000e+00> : vector<16x128xf32>
    %2 = tpu.matmul %1, %0, %cst {dimension_numbers = #tpu.dot_dimension_numbers<[1], [0], [0], [1], [0, 0, 1, 1], [], []>} : vector<16x11xf32>, vector<11x128xf32>, vector<16x128xf32> -> vector<16x128xf32>
    %c0_3 = arith.constant 0 : index
    %c0_4 = arith.constant 0 : index
    %3 = vector.load %arg3[%c0_3, %c0_4] : memref<16x1xf32, #tpu.memory_space<vmem>>, vector<16x1xf32>
    %4 = vector.broadcast %3 : vector<16x1xf32> to vector<16x128xf32>
    %5 = arith.addf %2, %4 : vector<16x128xf32>
    %cst_5 = arith.constant 0.000000e+00 : f32
    %6 = vector.broadcast %cst_5 : f32 to vector<16x128xf32>
    %7 = arith.maximumf %5, %6 : vector<16x128xf32>
    %c0_6 = arith.constant 0 : index
    %c0_7 = arith.constant 0 : index
    %8 = vector.load %arg4[%c0_6, %c0_7] : memref<32x16xf32, #tpu.memory_space<vmem>>, vector<32x16xf32>
    %cst_8 = arith.constant dense<0.000000e+00> : vector<32x128xf32>
    %9 = tpu.matmul %8, %7, %cst_8 {dimension_numbers = #tpu.dot_dimension_numbers<[1], [0], [0], [1], [0, 0, 1, 1], [], []>} : vector<32x16xf32>, vector<16x128xf32>, vector<32x128xf32> -> vector<32x128xf32>
    %c0_9 = arith.constant 0 : index
    %c0_10 = arith.constant 0 : index
    %10 = vector.load %arg5[%c0_9, %c0_10] : memref<32x1xf32, #tpu.memory_space<vmem>>, vector<32x1xf32>
    %11 = vector.broadcast %10 : vector<32x1xf32> to vector<32x128xf32>
    %12 = arith.addf %9, %11 : vector<32x128xf32>
    %cst_11 = arith.constant 0.000000e+00 : f32
    %13 = vector.broadcast %cst_11 : f32 to vector<32x128xf32>
    %14 = arith.maximumf %12, %13 : vector<32x128xf32>
    %c0_12 = arith.constant 0 : index
    %c0_13 = arith.constant 0 : index
    %15 = vector.load %arg6[%c0_12, %c0_13] : memref<32x32xf32, #tpu.memory_space<vmem>>, vector<32x32xf32>
    %cst_14 = arith.constant dense<0.000000e+00> : vector<32x128xf32>
    %16 = tpu.matmul %15, %14, %cst_14 {dimension_numbers = #tpu.dot_dimension_numbers<[1], [0], [0], [1], [0, 0, 1, 1], [], []>} : vector<32x32xf32>, vector<32x128xf32>, vector<32x128xf32> -> vector<32x128xf32>
    %c0_15 = arith.constant 0 : index
    %c0_16 = arith.constant 0 : index
    %17 = vector.load %arg7[%c0_15, %c0_16] : memref<32x1xf32, #tpu.memory_space<vmem>>, vector<32x1xf32>
    %18 = vector.broadcast %17 : vector<32x1xf32> to vector<32x128xf32>
    %19 = arith.addf %16, %18 : vector<32x128xf32>
    %cst_17 = arith.constant 0.000000e+00 : f32
    %20 = vector.broadcast %cst_17 : f32 to vector<32x128xf32>
    %21 = arith.maximumf %19, %20 : vector<32x128xf32>
    %c0_18 = arith.constant 0 : index
    %c0_19 = arith.constant 0 : index
    %22 = vector.load %arg8[%c0_18, %c0_19] : memref<1x32xf32, #tpu.memory_space<vmem>>, vector<1x32xf32>
    %cst_20 = arith.constant dense<0.000000e+00> : vector<1x128xf32>
    %23 = tpu.matmul %22, %21, %cst_20 {dimension_numbers = #tpu.dot_dimension_numbers<[1], [0], [0], [1], [0, 0, 1, 1], [], []>} : vector<1x32xf32>, vector<32x128xf32>, vector<1x128xf32> -> vector<1x128xf32>
    %c0_21 = arith.constant 0 : index
    %c0_22 = arith.constant 0 : index
    %24 = memref.load %arg9[%c0_21, %c0_22] : memref<1x1xf32, #tpu.memory_space<smem>>
    %25 = vector.broadcast %24 : f32 to vector<1x128xf32>
    %26 = arith.addf %23, %25 : vector<1x128xf32>
    %c0_23 = arith.constant 0 : index
    %c0_24 = arith.constant 0 : index
    %27 = vector.load %arg10[%c0_23, %c0_24] : memref<1x128xf32, #tpu.memory_space<vmem>>, vector<1x128xf32>
    tpu.vector_store %arg10[%c0_23, %c0_24], %26 {strides = array<i32>} : memref<1x128xf32, #tpu.memory_space<vmem>>, vector<1x128xf32>,
    return
  }
  func.func @transform_0(%arg0: i32) -> (i32, i32) {
    %c0_i32 = arith.constant 0 : i32
    %c0_i32_0 = arith.constant 0 : i32
    return %c0_i32, %arg0 : i32, i32
  }
  func.func @transform_1(%arg0: i32) -> (i32, i32) {
    %c0_i32 = arith.constant 0 : i32
    %c0_i32_0 = arith.constant 0 : i32
    %c0_i32_1 = arith.constant 0 : i32
    return %c0_i32, %c0_i32_0 : i32, i32
  }
  func.func @transform_2(%arg0: i32) -> (i32, i32) {
    %c0_i32 = arith.constant 0 : i32
    %c0_i32_0 = arith.constant 0 : i32
    %c0_i32_1 = arith.constant 0 : i32
    return %c0_i32, %c0_i32_0 : i32, i32
  }
  func.func @transform_3(%arg0: i32) -> (i32, i32) {
    %c0_i32 = arith.constant 0 : i32
    %c0_i32_0 = arith.constant 0 : i32
    %c0_i32_1 = arith.constant 0 : i32
    return %c0_i32, %c0_i32_0 : i32, i32
  }
  func.func @transform_4(%arg0: i32) -> (i32, i32) {
    %c0_i32 = arith.constant 0 : i32
    %c0_i32_0 = arith.constant 0 : i32
    %c0_i32_1 = arith.constant 0 : i32
    return %c0_i32, %c0_i32_0 : i32, i32
  }
  func.func @transform_5(%arg0: i32) -> (i32, i32) {
    %c0_i32 = arith.constant 0 : i32
    %c0_i32_0 = arith.constant 0 : i32
    %c0_i32_1 = arith.constant 0 : i32
    return %c0_i32, %c0_i32_0 : i32, i32
  }
  func.func @transform_6(%arg0: i32) -> (i32, i32) {
    %c0_i32 = arith.constant 0 : i32
    %c0_i32_0 = arith.constant 0 : i32
    %c0_i32_1 = arith.constant 0 : i32
    return %c0_i32, %c0_i32_0 : i32, i32
  }
  func.func @transform_7(%arg0: i32) -> (i32, i32) {
    %c0_i32 = arith.constant 0 : i32
    %c0_i32_0 = arith.constant 0 : i32
    %c0_i32_1 = arith.constant 0 : i32
    return %c0_i32, %c0_i32_0 : i32, i32
  }
  func.func @transform_8(%arg0: i32) -> (i32, i32) {
    %c0_i32 = arith.constant 0 : i32
    %c0_i32_0 = arith.constant 0 : i32
    %c0_i32_1 = arith.constant 0 : i32
    return %c0_i32, %c0_i32_0 : i32, i32
  }
  func.func @transform_9(%arg0: i32) -> (i32, i32) {
    %c0_i32 = arith.constant 0 : i32
    %c0_i32_0 = arith.constant 0 : i32
    return %c0_i32, %arg0 : i32, i32
  }
}

</mosaic_0001>

<llo_original>
// kernel: ann_wine_forward.1
$region0: #{ann_wine_forward.1}
  #allocation0 [shape = 'u32[]', space=smem, size = 0x4, offset = 0x4, fixed_abs, tag = 'smem constant byte address 0x4 - core index']
  #allocation1 [shape = 'u32[144,128]{1,0:T(1,128)}', space=vmem, size = 0x12000, scoped, tag = 'internal scratch']
  #allocation2 [shape = 'f32[1,1]{1,0:T(1,128)S(6)}', space=smem, size = 0x200, scoped, tag = 'scoped memory for ann_wine_forward.1']
  %s0 = inlined_call_operand.vmem [shape: f32[11,128], index: 0, kind: input, shape index: {}]
  %s1 = inlined_call_operand.vmem [shape: f32[16,11], index: 1, kind: input, shape index: {}]
  %s2 = inlined_call_operand.vmem [shape: f32[16,1], index: 2, kind: input, shape index: {}]
  %s3 = inlined_call_operand.vmem [shape: f32[32,16], index: 3, kind: input, shape index: {}]
  %s4 = inlined_call_operand.vmem [shape: f32[32,1], index: 4, kind: input, shape index: {}]
  %s5 = inlined_call_operand.vmem [shape: f32[32,32], index: 5, kind: input, shape index: {}]
  %s6 = inlined_call_operand.vmem [shape: f32[32,1], index: 6, kind: input, shape index: {}]
  %s7 = inlined_call_operand.vmem [shape: f32[1,32], index: 7, kind: input, shape index: {}]
  %s8 = inlined_call_operand.<no memory space> [shape: f32[1,1], index: 8, kind: input, shape index: {}]
  %s9 = inlined_call_operand.vmem [shape: f32[1,128], index: 9, kind: output, shape index: {}]
  %s10 = sld [smem:[#allocation0]]
  $region46: #{ann_wine_forward.1} parent=0
    _
  %s12 = ssub.s32 1, %s10
  %s13 = scalar_select 0, %s12, %s10
  %14 = sst [smem:[#allocation2]] %s8
  // Predicated region
  $region2: #{ann_wine_forward.1} parent=0 // pred_check
    _
  $region3: #{ann_wine_forward.1} parent=0 // pred_check_branch
    %16 = sbr.rel (0) target = $region5
  $region4: #{ann_wine_forward.1} parent=0 // pred_region
    _
  $region5: #{ann_wine_forward.1} parent=0 // pred_fallthru
    _
  // Predicated region
  $region6: #{ann_wine_forward.1} parent=0 // pred_check
    _
  $region7: #{ann_wine_forward.1} parent=0 // pred_check_branch
    %18 = sbr.rel (0) target = $region9
  $region8: #{ann_wine_forward.1} parent=0 // pred_region
    _
  $region9: #{ann_wine_forward.1} parent=0 // pred_fallthru
    _
  // Predicated region
  $region10: #{ann_wine_forward.1} parent=0 // pred_check
    _
  $region11: #{ann_wine_forward.1} parent=0 // pred_check_branch
    %20 = sbr.rel (0) target = $region13
  $region12: #{ann_wine_forward.1} parent=0 // pred_region
    _
  $region13: #{ann_wine_forward.1} parent=0 // pred_fallthru
    _
  // Predicated region
  $region14: #{ann_wine_forward.1} parent=0 // pred_check
    _
  $region15: #{ann_wine_forward.1} parent=0 // pred_check_branch
    %22 = sbr.rel (0) target = $region17
  $region16: #{ann_wine_forward.1} parent=0 // pred_region
    _
  $region17: #{ann_wine_forward.1} parent=0 // pred_fallthru
    _
  // Predicated region
  $region18: #{ann_wine_forward.1} parent=0 // pred_check
    _
  $region19: #{ann_wine_forward.1} parent=0 // pred_check_branch
    %24 = sbr.rel (0) target = $region21
  $region20: #{ann_wine_forward.1} parent=0 // pred_region
    _
  $region21: #{ann_wine_forward.1} parent=0 // pred_fallthru
    _
  // Predicated region
  $region22: #{ann_wine_forward.1} parent=0 // pred_check
    _
  $region23: #{ann_wine_forward.1} parent=0 // pred_check_branch
    %26 = sbr.rel (0) target = $region25
  $region24: #{ann_wine_forward.1} parent=0 // pred_region
    _
  $region25: #{ann_wine_forward.1} parent=0 // pred_fallthru
    _
  // Predicated region
  $region26: #{ann_wine_forward.1} parent=0 // pred_check
    _
  $region27: #{ann_wine_forward.1} parent=0 // pred_check_branch
    %28 = sbr.rel (0) target = $region29
  $region28: #{ann_wine_forward.1} parent=0 // pred_region
    _
  $region29: #{ann_wine_forward.1} parent=0 // pred_fallthru
    _
  // Predicated region
  $region30: #{ann_wine_forward.1} parent=0 // pred_check
    _
  $region31: #{ann_wine_forward.1} parent=0 // pred_check_branch
    %30 = sbr.rel (0) target = $region33
  $region32: #{ann_wine_forward.1} parent=0 // pred_region
    _
  $region33: #{ann_wine_forward.1} parent=0 // pred_fallthru
    _
  // Predicated region
  $region34: #{ann_wine_forward.1} parent=0 // pred_check
    _
  $region35: #{ann_wine_forward.1} parent=0 // pred_check_branch
    %32 = sbr.rel (0) target = $region37
  $region36: #{ann_wine_forward.1} parent=0 // pred_region
    _
  $region37: #{ann_wine_forward.1} parent=0 // pred_fallthru
    _
  %v33 = vld [vmem:[%s0] sm:$0xff]
  %v34 = vld [vmem:[%s0 + $0x8] sm:$0x7]
  %v35 = vld [vmem:[%s1] sm:$0xff]
  %v36 = vld [vmem:[%s1 + $0x8] sm:$0xff]
  %v37 = vld [vmem:[%s2] sm:$0xff]
  %v38 = vld [vmem:[%s2 + $0x8] sm:$0xff]
  %40 = vset.pattern.permute.xlu0 0
  %41 = vperm.xlu0 %40, %v37
  %v42 = vpop.permute.xlu0 %41
  %45 = vset.pattern.permute.xlu0 0
  %46 = vperm.xlu0 %45, %v38
  %v47 = vpop.permute.xlu0 %46
  %vm49 = vcmask 89088
  %v51 = vsel %vm49, %v35, 0
  %v54 = vsel %vm49, %v36, 0
  %vm56 = vcmask 1042432
  %v58 = vsel %vm56, %v34, 0
  %60 = vmatprep.subr.mxu0 0.0
  %61 = vmatpush1.msra.mxu0 %v33
  %62 = vmatprep.subr.mxu0 0.0
  %63 = vmatpush1.msra.mxu0 %v58
  %64 = vmatprep.subr.mxu0 0.0
  %65 = vmatpush1.msra.mxu0 0.0
  %66 = vmatprep.subr.mxu0 0.0
  %67 = vmatpush1.msra.mxu0 0.0
  %68 = vmatprep.subr.mxu0 0.0
  %69 = vmatpush1.msra.mxu0 0.0
  %70 = vmatprep.subr.mxu0 0.0
  %71 = vmatpush1.msra.mxu0 0.0
  %72 = vmatprep.subr.mxu0 0.0
  %73 = vmatpush1.msra.mxu0 0.0
  %74 = vmatprep.subr.mxu0 0.0
  %75 = vmatpush1.msra.mxu0 0.0
  %76 = vmatprep.subr.mxu0 0.0
  %77 = vmatpush1.msra.mxu0 0.0
  %78 = vmatprep.subr.mxu0 0.0
  %79 = vmatpush1.msra.mxu0 0.0
  %80 = vmatprep.subr.mxu0 0.0
  %81 = vmatpush1.msra.mxu0 0.0
  %82 = vmatprep.subr.mxu0 0.0
  %83 = vmatpush1.msra.mxu0 0.0
  %84 = vmatprep.subr.mxu0 0.0
  %85 = vmatpush1.msra.mxu0 0.0
  %86 = vmatprep.subr.mxu0 0.0
  %87 = vmatpush1.msra.mxu0 0.0
  %88 = vmatprep.subr.mxu0 0.0
  %89 = vmatpush1.msra.mxu0 0.0
  %90 = vmatprep.subr.mxu0 0.0
  %91 = vmatpush1.msra.mxu0 0.0
  %92 = vmatprep.subr.mxu0 0.0
  %93 = vmatpush1.msra.mxu0 0.0
  %94 = vmatprep.subr.mxu0 0.0
  %95 = vmatpush1.msra.mxu0 0.0
  %96 = vmatprep.subr.mxu0 0.0
  %97 = vmatpush1.msra.mxu0 0.0
  %98 = vmatprep.subr.mxu0 0.0
  %99 = vmatpush1.msra.mxu0 0.0
  %100 = vmatprep.subr.mxu0 0.0
  %101 = vmatpush1.msra.mxu0 0.0
  %102 = vmatprep.subr.mxu0 0.0
  %103 = vmatpush1.msra.mxu0 0.0
  %104 = vmatprep.subr.mxu0 0.0
  %105 = vmatpush1.msra.mxu0 0.0
  %106 = vmatprep.subr.mxu0 0.0
  %107 = vmatpush1.msra.mxu0 0.0
  %108 = vmatprep.subr.mxu0 0.0
  %109 = vmatpush1.msra.mxu0 0.0
  %110 = vmatprep.subr.mxu0 0.0
  %111 = vmatpush1.msra.mxu0 0.0
  %112 = vmatprep.subr.mxu0 0.0
  %113 = vmatpush1.msra.mxu0 0.0
  %114 = vmatprep.subr.mxu0 0.0
  %115 = vmatpush1.msra.mxu0 0.0
  %116 = vmatprep.subr.mxu0 0.0
  %117 = vmatpush1.msra.mxu0 0.0
  %118 = vmatprep.subr.mxu0 0.0
  %119 = vmatpush1.msra.mxu0 0.0
  %120 = vmatprep.subr.mxu0 0.0
  %121 = vmatpush1.msra.mxu0 0.0
  %122 = vmatprep.subr.mxu0 0.0
  %123 = vmatpush1.msra.mxu0 0.0
  %124 = vmatprep.mubr.f32.mxu0 0.0
  %125 = vmatmul.mubr.f32.gmra.mrb[0].mxu0 %v51
  %v126 = vpop.f32.mrb[0].mxu0
  %v127 = vadd.f32 %v42, %v126
  %v128 = vpop.f32.mrb[0].mxu0
  %129 = vmatprep.mubr.f32.mxu0 0.0
  %130 = vmatmul.mubr.f32.gmra.mrb[0].mxu0 %v54
  %v131 = vpop.f32.mrb[0].mxu0
  %v132 = vadd.f32 %v47, %v131
  %v133 = vpop.f32.mrb[0].mxu0
  %134 = vdwg.mxu0
  %v135 = vmax.f32 %v127, 0.0
  %v136 = vmax.f32 %v132, 0.0
  %v137 = vld [vmem:[%s3] sm:$0xff]
  %v138 = vld [vmem:[%s3 + $0x8] sm:$0xff]
  %v139 = vld [vmem:[%s3 + $0x10] sm:$0xff]
  %v140 = vld [vmem:[%s3 + $0x18] sm:$0xff]
  %v141 = vld [vmem:[%s4] sm:$0xff]
  %v142 = vld [vmem:[%s4 + $0x8] sm:$0xff]
  %v143 = vld [vmem:[%s4 + $0x10] sm:$0xff]
  %v144 = vld [vmem:[%s4 + $0x18] sm:$0xff]
  %146 = vset.pattern.permute.xlu0 0
  %147 = vperm.xlu0 %146, %v141
  %v148 = vpop.permute.xlu0 %147
  %151 = vset.pattern.permute.xlu0 0
  %152 = vperm.xlu0 %151, %v142
  %v153 = vpop.permute.xlu0 %152
  %156 = vset.pattern.permute.xlu0 0
  %157 = vperm.xlu0 %156, %v143
  %v158 = vpop.permute.xlu0 %157
  %161 = vset.pattern.permute.xlu0 0
  %162 = vperm.xlu0 %161, %v144
  %v163 = vpop.permute.xlu0 %162
  %vm165 = vcmask 130048
  %v167 = vsel %vm165, %v137, 0
  %v170 = vsel %vm165, %v138, 0
  %v173 = vsel %vm165, %v139, 0
  %v176 = vsel %vm165, %v140, 0
  %178 = vmatprep.subr.mxu0 0.0
  %179 = vmatpush1.msra.mxu0 %v135
  %180 = vmatprep.subr.mxu0 0.0
  %181 = vmatpush1.msra.mxu0 %v136
  %182 = vmatprep.subr.mxu0 0.0
  %183 = vmatpush1.msra.mxu0 0.0
  %184 = vmatprep.subr.mxu0 0.0
  %185 = vmatpush1.msra.mxu0 0.0
  %186 = vmatprep.subr.mxu0 0.0
  %187 = vmatpush1.msra.mxu0 0.0
  %188 = vmatprep.subr.mxu0 0.0
  %189 = vmatpush1.msra.mxu0 0.0
  %190 = vmatprep.subr.mxu0 0.0
  %191 = vmatpush1.msra.mxu0 0.0
  %192 = vmatprep.subr.mxu0 0.0
  %193 = vmatpush1.msra.mxu0 0.0
  %194 = vmatprep.subr.mxu0 0.0
  %195 = vmatpush1.msra.mxu0 0.0
  %196 = vmatprep.subr.mxu0 0.0
  %197 = vmatpush1.msra.mxu0 0.0
  %198 = vmatprep.subr.mxu0 0.0
  %199 = vmatpush1.msra.mxu0 0.0
  %200 = vmatprep.subr.mxu0 0.0
  %201 = vmatpush1.msra.mxu0 0.0
  %202 = vmatprep.subr.mxu0 0.0
  %203 = vmatpush1.msra.mxu0 0.0
  %204 = vmatprep.subr.mxu0 0.0
  %205 = vmatpush1.msra.mxu0 0.0
  %206 = vmatprep.subr.mxu0 0.0
  %207 = vmatpush1.msra.mxu0 0.0
  %208 = vmatprep.subr.mxu0 0.0
  %209 = vmatpush1.msra.mxu0 0.0
  %210 = vmatprep.subr.mxu0 0.0
  %211 = vmatpush1.msra.mxu0 0.0
  %212 = vmatprep.subr.mxu0 0.0
  %213 = vmatpush1.msra.mxu0 0.0
  %214 = vmatprep.subr.mxu0 0.0
  %215 = vmatpush1.msra.mxu0 0.0
  %216 = vmatprep.subr.mxu0 0.0
  %217 = vmatpush1.msra.mxu0 0.0
  %218 = vmatprep.subr.mxu0 0.0
  %219 = vmatpush1.msra.mxu0 0.0
  %220 = vmatprep.subr.mxu0 0.0
  %221 = vmatpush1.msra.mxu0 0.0
  %222 = vmatprep.subr.mxu0 0.0
  %223 = vmatpush1.msra.mxu0 0.0
  %224 = vmatprep.subr.mxu0 0.0
  %225 = vmatpush1.msra.mxu0 0.0
  %226 = vmatprep.subr.mxu0 0.0
  %227 = vmatpush1.msra.mxu0 0.0
  %228 = vmatprep.subr.mxu0 0.0
  %229 = vmatpush1.msra.mxu0 0.0
  %230 = vmatprep.subr.mxu0 0.0
  %231 = vmatpush1.msra.mxu0 0.0
  %232 = vmatprep.subr.mxu0 0.0
  %233 = vmatpush1.msra.mxu0 0.0
  %234 = vmatprep.subr.mxu0 0.0
  %235 = vmatpush1.msra.mxu0 0.0
  %236 = vmatprep.subr.mxu0 0.0
  %237 = vmatpush1.msra.mxu0 0.0
  %238 = vmatprep.subr.mxu0 0.0
  %239 = vmatpush1.msra.mxu0 0.0
  %240 = vmatprep.subr.mxu0 0.0
  %241 = vmatpush1.msra.mxu0 0.0
  %242 = vmatprep.mubr.f32.mxu0 0.0
  %243 = vmatmul.mubr.f32.gmra.mrb[0].mxu0 %v167
  %v244 = vpop.f32.mrb[0].mxu0
  %v245 = vadd.f32 %v148, %v244
  %v246 = vpop.f32.mrb[0].mxu0
  %247 = vmatprep.mubr.f32.mxu0 0.0
  %248 = vmatmul.mubr.f32.gmra.mrb[0].mxu0 %v170
  %v249 = vpop.f32.mrb[0].mxu0
  %v250 = vadd.f32 %v153, %v249
  %v251 = vpop.f32.mrb[0].mxu0
  %252 = vmatprep.mubr.f32.mxu0 0.0
  %253 = vmatmul.mubr.f32.gmra.mrb[0].mxu0 %v173
  %v254 = vpop.f32.mrb[0].mxu0
  %v255 = vadd.f32 %v158, %v254
  %v256 = vpop.f32.mrb[0].mxu0
  %257 = vmatprep.mubr.f32.mxu0 0.0
  %258 = vmatmul.mubr.f32.gmra.mrb[0].mxu0 %v176
  %v259 = vpop.f32.mrb[0].mxu0
  %v260 = vadd.f32 %v163, %v259
  %v261 = vpop.f32.mrb[0].mxu0
  %262 = vdwg.mxu0
  %v263 = vmax.f32 %v245, 0.0
  %v264 = vmax.f32 %v250, 0.0
  %v265 = vmax.f32 %v255, 0.0
  %v266 = vmax.f32 %v260, 0.0
  %v267 = vld [vmem:[%s5] sm:$0xff]
  %v268 = vld [vmem:[%s5 + $0x8] sm:$0xff]
  %v269 = vld [vmem:[%s5 + $0x10] sm:$0xff]
  %v270 = vld [vmem:[%s5 + $0x18] sm:$0xff]
  %v271 = vld [vmem:[%s6] sm:$0xff]
  %v272 = vld [vmem:[%s6 + $0x8] sm:$0xff]
  %v273 = vld [vmem:[%s6 + $0x10] sm:$0xff]
  %v274 = vld [vmem:[%s6 + $0x18] sm:$0xff]
  %276 = vset.pattern.permute.xlu0 0
  %277 = vperm.xlu0 %276, %v271
  %v278 = vpop.permute.xlu0 %277
  %281 = vset.pattern.permute.xlu0 0
  %282 = vperm.xlu0 %281, %v272
  %v283 = vpop.permute.xlu0 %282
  %286 = vset.pattern.permute.xlu0 0
  %287 = vperm.xlu0 %286, %v273
  %v288 = vpop.permute.xlu0 %287
  %291 = vset.pattern.permute.xlu0 0
  %292 = vperm.xlu0 %291, %v274
  %v293 = vpop.permute.xlu0 %292
  %vm295 = vcmask 261120
  %v297 = vsel %vm295, %v267, 0
  %v300 = vsel %vm295, %v268, 0
  %v303 = vsel %vm295, %v269, 0
  %v306 = vsel %vm295, %v270, 0
  %308 = vmatprep.subr.mxu0 0.0
  %309 = vmatpush1.msra.mxu0 %v263
  %310 = vmatprep.subr.mxu0 0.0
  %311 = vmatpush1.msra.mxu0 %v264
  %312 = vmatprep.subr.mxu0 0.0
  %313 = vmatpush1.msra.mxu0 %v265
  %314 = vmatprep.subr.mxu0 0.0
  %315 = vmatpush1.msra.mxu0 %v266
  %316 = vmatprep.subr.mxu0 0.0
  %317 = vmatpush1.msra.mxu0 0.0
  %318 = vmatprep.subr.mxu0 0.0
  %319 = vmatpush1.msra.mxu0 0.0
  %320 = vmatprep.subr.mxu0 0.0
  %321 = vmatpush1.msra.mxu0 0.0
  %322 = vmatprep.subr.mxu0 0.0
  %323 = vmatpush1.msra.mxu0 0.0
  %324 = vmatprep.subr.mxu0 0.0
  %325 = vmatpush1.msra.mxu0 0.0
  %326 = vmatprep.subr.mxu0 0.0
  %327 = vmatpush1.msra.mxu0 0.0
  %328 = vmatprep.subr.mxu0 0.0
  %329 = vmatpush1.msra.mxu0 0.0
  %330 = vmatprep.subr.mxu0 0.0
  %331 = vmatpush1.msra.mxu0 0.0
  %332 = vmatprep.subr.mxu0 0.0
  %333 = vmatpush1.msra.mxu0 0.0
  %334 = vmatprep.subr.mxu0 0.0
  %335 = vmatpush1.msra.mxu0 0.0
  %336 = vmatprep.subr.mxu0 0.0
  %337 = vmatpush1.msra.mxu0 0.0
  %338 = vmatprep.subr.mxu0 0.0
  %339 = vmatpush1.msra.mxu0 0.0
  %340 = vmatprep.subr.mxu0 0.0
  %341 = vmatpush1.msra.mxu0 0.0
  %342 = vmatprep.subr.mxu0 0.0
  %343 = vmatpush1.msra.mxu0 0.0
  %344 = vmatprep.subr.mxu0 0.0
  %345 = vmatpush1.msra.mxu0 0.0
  %346 = vmatprep.subr.mxu0 0.0
  %347 = vmatpush1.msra.mxu0 0.0
  %348 = vmatprep.subr.mxu0 0.0
  %349 = vmatpush1.msra.mxu0 0.0
  %350 = vmatprep.subr.mxu0 0.0
  %351 = vmatpush1.msra.mxu0 0.0
  %352 = vmatprep.subr.mxu0 0.0
  %353 = vmatpush1.msra.mxu0 0.0
  %354 = vmatprep.subr.mxu0 0.0
  %355 = vmatpush1.msra.mxu0 0.0
  %356 = vmatprep.subr.mxu0 0.0
  %357 = vmatpush1.msra.mxu0 0.0
  %358 = vmatprep.subr.mxu0 0.0
  %359 = vmatpush1.msra.mxu0 0.0
  %360 = vmatprep.subr.mxu0 0.0
  %361 = vmatpush1.msra.mxu0 0.0
  %362 = vmatprep.subr.mxu0 0.0
  %363 = vmatpush1.msra.mxu0 0.0
  %364 = vmatprep.subr.mxu0 0.0
  %365 = vmatpush1.msra.mxu0 0.0
  %366 = vmatprep.subr.mxu0 0.0
  %367 = vmatpush1.msra.mxu0 0.0
  %368 = vmatprep.subr.mxu0 0.0
  %369 = vmatpush1.msra.mxu0 0.0
  %370 = vmatprep.subr.mxu0 0.0
  %371 = vmatpush1.msra.mxu0 0.0
  %372 = vmatprep.mubr.f32.mxu0 0.0
  %373 = vmatmul.mubr.f32.gmra.mrb[0].mxu0 %v297
  %v374 = vpop.f32.mrb[0].mxu0
  %v375 = vadd.f32 %v278, %v374
  %v376 = vpop.f32.mrb[0].mxu0
  %377 = vmatprep.mubr.f32.mxu0 0.0
  %378 = vmatmul.mubr.f32.gmra.mrb[0].mxu0 %v300
  %v379 = vpop.f32.mrb[0].mxu0
  %v380 = vadd.f32 %v283, %v379
  %v381 = vpop.f32.mrb[0].mxu0
  %382 = vmatprep.mubr.f32.mxu0 0.0
  %383 = vmatmul.mubr.f32.gmra.mrb[0].mxu0 %v303
  %v384 = vpop.f32.mrb[0].mxu0
  %v385 = vadd.f32 %v288, %v384
  %v386 = vpop.f32.mrb[0].mxu0
  %387 = vmatprep.mubr.f32.mxu0 0.0
  %388 = vmatmul.mubr.f32.gmra.mrb[0].mxu0 %v306
  %v389 = vpop.f32.mrb[0].mxu0
  %v390 = vadd.f32 %v293, %v389
  %v391 = vpop.f32.mrb[0].mxu0
  %392 = vdwg.mxu0
  %v393 = vmax.f32 %v375, 0.0
  %v394 = vmax.f32 %v380, 0.0
  %v395 = vmax.f32 %v385, 0.0
  %v396 = vmax.f32 %v390, 0.0
  %v397 = vld [vmem:[%s7] sm:$0x1]
  %s398 = sld [smem:[#allocation2]]
  %v399 = vstv %s398
  %v401 = vsel %vm295, %v397, 0
  %403 = vmatprep.subr.mxu0 0.0
  %404 = vmatpush1.msra.mxu0 %v393
  %405 = vmatprep.subr.mxu0 0.0
  %406 = vmatpush1.msra.mxu0 %v394
  %407 = vmatprep.subr.mxu0 0.0
  %408 = vmatpush1.msra.mxu0 %v395
  %409 = vmatprep.subr.mxu0 0.0
  %410 = vmatpush1.msra.mxu0 %v396
  %411 = vmatprep.subr.mxu0 0.0
  %412 = vmatpush1.msra.mxu0 0.0
  %413 = vmatprep.subr.mxu0 0.0
  %414 = vmatpush1.msra.mxu0 0.0
  %415 = vmatprep.subr.mxu0 0.0
  %416 = vmatpush1.msra.mxu0 0.0
  %417 = vmatprep.subr.mxu0 0.0
  %418 = vmatpush1.msra.mxu0 0.0
  %419 = vmatprep.subr.mxu0 0.0
  %420 = vmatpush1.msra.mxu0 0.0
  %421 = vmatprep.subr.mxu0 0.0
  %422 = vmatpush1.msra.mxu0 0.0
  %423 = vmatprep.subr.mxu0 0.0
  %424 = vmatpush1.msra.mxu0 0.0
  %425 = vmatprep.subr.mxu0 0.0
  %426 = vmatpush1.msra.mxu0 0.0
  %427 = vmatprep.subr.mxu0 0.0
  %428 = vmatpush1.msra.mxu0 0.0
  %429 = vmatprep.subr.mxu0 0.0
  %430 = vmatpush1.msra.mxu0 0.0
  %431 = vmatprep.subr.mxu0 0.0
  %432 = vmatpush1.msra.mxu0 0.0
  %433 = vmatprep.subr.mxu0 0.0
  %434 = vmatpush1.msra.mxu0 0.0
  %435 = vmatprep.subr.mxu0 0.0
  %436 = vmatpush1.msra.mxu0 0.0
  %437 = vmatprep.subr.mxu0 0.0
  %438 = vmatpush1.msra.mxu0 0.0
  %439 = vmatprep.subr.mxu0 0.0
  %440 = vmatpush1.msra.mxu0 0.0
  %441 = vmatprep.subr.mxu0 0.0
  %442 = vmatpush1.msra.mxu0 0.0
  %443 = vmatprep.subr.mxu0 0.0
  %444 = vmatpush1.msra.mxu0 0.0
  %445 = vmatprep.subr.mxu0 0.0
  %446 = vmatpush1.msra.mxu0 0.0
  %447 = vmatprep.subr.mxu0 0.0
  %448 = vmatpush1.msra.mxu0 0.0
  %449 = vmatprep.subr.mxu0 0.0
  %450 = vmatpush1.msra.mxu0 0.0
  %451 = vmatprep.subr.mxu0 0.0
  %452 = vmatpush1.msra.mxu0 0.0
  %453 = vmatprep.subr.mxu0 0.0
  %454 = vmatpush1.msra.mxu0 0.0
  %455 = vmatprep.subr.mxu0 0.0
  %456 = vmatpush1.msra.mxu0 0.0
  %457 = vmatprep.subr.mxu0 0.0
  %458 = vmatpush1.msra.mxu0 0.0
  %459 = vmatprep.subr.mxu0 0.0
  %460 = vmatpush1.msra.mxu0 0.0
  %461 = vmatprep.subr.mxu0 0.0
  %462 = vmatpush1.msra.mxu0 0.0
  %463 = vmatprep.subr.mxu0 0.0
  %464 = vmatpush1.msra.mxu0 0.0
  %465 = vmatprep.subr.mxu0 0.0
  %466 = vmatpush1.msra.mxu0 0.0
  %467 = vmatprep.mubr.f32.mxu0 0.0
  %468 = vmatmul.mubr.f32.gmra.mrb[0].mxu0 %v401
  %v469 = vpop.f32.mrb[0].mxu0
  %v470 = vadd.f32 %v399, %v469
  %v471 = vpop.f32.mrb[0].mxu0
  %472 = vdwg.mxu0
  %473 = vst [vmem:[%s9] sm:$0x1] %v470
  // Predicated region
  $region38: #{ann_wine_forward.1} parent=0 // pred_check
    _
  $region39: #{ann_wine_forward.1} parent=0 // pred_check_branch
    %475 = sbr.rel (0) target = $region41
  $region40: #{ann_wine_forward.1} parent=0 // pred_region
    _
  $region41: #{ann_wine_forward.1} parent=0 // pred_fallthru
    _
  // Predicated region
  $region42: #{ann_wine_forward.1} parent=0 // pred_check
    _
  $region43: #{ann_wine_forward.1} parent=0 // pred_check_branch
    %477 = sbr.rel (0) target = $region45
  $region44: #{ann_wine_forward.1} parent=0 // pred_region
    _
  $region45: #{ann_wine_forward.1} parent=0 // pred_fallthru
    _

</llo_original>
